<compile_context>
chip_gen: v5e
topology: v5e:2x2
jax: 0.10.0
libtpu: 0.0.40
codegen_flags: <defaults>
</compile_context>

<pallas_src>
import functools

import jax
import jax.numpy as jnp
from jax.experimental import pallas as pl
from jax.experimental.pallas import tpu as pltpu

LANES = 128            # vreg lane width: pad every feature dim to this
MIB = 1 << 20

ROW_TILE = 512         # output-row tile for the K-tiled path
K_TILE = 2048          # aggregation (node-contraction) tile for the K-tiled path
FUSED_VMEM_BUDGET = 36 * MIB   # use the fused 3-layer kernel below this estimate


def _round_up(v, m):
    return (v + m - 1) // m * m


def _pad2d(arr, rows, cols, dtype):
    r, c = arr.shape
    return jnp.zeros((rows, cols), dtype).at[:r, :c].set(arr.astype(dtype))


def _pick_vmem_limit():
    """Generation-aware scoped-VMEM limit (defaults are only 16/32 MiB)."""
    try:
        cap = pltpu.get_tpu_info().vmem_capacity_bytes
        return min(int(cap * 3 // 4), 100 * MIB)
    except Exception:
        pass
    try:
        kind = jax.devices()[0].device_kind.lower()
        if "v5" in kind or "v6" in kind:
            return 96 * MIB          # 128 MiB physical VMEM
    except Exception:
        pass
    return 48 * MIB                  # safe on v7x's 64 MiB as well


def _fused_vmem_estimate(n_pad, in_pad, hid_pad, out_pad):
    """Pessimistic (double-buffered) VMEM estimate for the fused kernel."""
    c_max = max(in_pad, hid_pad, out_pad)
    io_bytes = (n_pad * n_pad * 2                      # A_hat, bf16
                + n_pad * in_pad * 2                   # X, bf16
                + n_pad * out_pad * 4                  # output, f32
                + (in_pad * hid_pad + hid_pad * hid_pad
                   + hid_pad * out_pad) * 2            # weights, bf16
                + (2 * hid_pad + out_pad) * 4)         # biases, f32
    intermediates = 4 * n_pad * c_max * 4              # in-kernel temporaries
    return 2 * io_bytes + intermediates


# ---------------------------------------------------------------------------
# Kernels
# ---------------------------------------------------------------------------
def _gcn_fused_kernel(a_ref, x_ref, w1_ref, b1_ref, w2_ref, b2_ref,
                      w3_ref, b3_ref, o_ref, *, out_c, transform_first):
    """All three GCNConv layers + ReLU + log_softmax with A_hat VMEM-resident.

    A_hat (the only O(N^2) operand) is read from HBM once for all layers
    instead of once per layer.
    """
    a = a_ref[...]                                     # bf16 (n_pad, n_pad)

    def conv(h_bf16, w_ref, b_ref, tf):
        if tf:    # transform-then-aggregate: cheaper when c_in_pad > c_out_pad
            hw = jnp.dot(h_bf16, w_ref[...], preferred_element_type=jnp.float32)
            out = jnp.dot(a, hw.astype(jnp.bfloat16),
                          preferred_element_type=jnp.float32)
        else:     # aggregate-then-transform
            agg = jnp.dot(a, h_bf16, preferred_element_type=jnp.float32)
            out = jnp.dot(agg.astype(jnp.bfloat16), w_ref[...],
                          preferred_element_type=jnp.float32)
        return out + b_ref[...]

    h = jnp.maximum(conv(x_ref[...], w1_ref, b1_ref, transform_first[0]), 0.0)
    h = jnp.maximum(conv(h.astype(jnp.bfloat16), w2_ref, b2_ref,
                         transform_first[1]), 0.0)
    h = conv(h.astype(jnp.bfloat16), w3_ref, b3_ref, transform_first[2])

    # stable log_softmax over the real columns; padded lanes never win max/sum
    col = jax.lax.broadcasted_iota(jnp.int32, h.shape, 1)
    valid = col < out_c
    h = jnp.where(valid, h, -jnp.inf)
    m = jnp.max(h, axis=1, keepdims=True)
    z = h - m
    lse = jnp.log(jnp.sum(jnp.exp(z), axis=1, keepdims=True))
    o_ref[...] = jnp.where(valid, z - lse, 0.0).astype(o_ref.dtype)


def _gcn_layer_kernel(a_ref, h_ref, w_ref, b_ref, o_ref, acc_ref, *,
                      apply_relu, final_log_softmax, out_c):
    """One GCNConv for a (row-tile, k-tile) grid cell.

    Accumulates A_tile @ H_tile over the K grid axis into an f32 scratch
    accumulator; on the last K step applies W, bias and the epilogue
    (ReLU or masked log_softmax) and writes one lane-dense output tile.
    """
    k = pl.program_id(1)

    @pl.when(k == 0)
    def _():
        acc_ref[...] = jnp.zeros_like(acc_ref)

    acc_ref[...] += jnp.dot(a_ref[...], h_ref[...],
                            preferred_element_type=jnp.float32)

    @pl.when(k == pl.num_programs(1) - 1)
    def _():
        h = jnp.dot(acc_ref[...].astype(jnp.bfloat16), w_ref[...],
                    preferred_element_type=jnp.float32) + b_ref[...]
        if final_log_softmax:
            col = jax.lax.broadcasted_iota(jnp.int32, h.shape, 1)
            valid = col < out_c
            h = jnp.where(valid, h, -jnp.inf)
            m = jnp.max(h, axis=1, keepdims=True)
            z = h - m
            lse = jnp.log(jnp.sum(jnp.exp(z), axis=1, keepdims=True))
            h = jnp.where(valid, z - lse, 0.0)
        elif apply_relu:
            h = jnp.maximum(h, 0.0)
        o_ref[...] = h.astype(o_ref.dtype)


# ---------------------------------------------------------------------------
# Layer wrappers
# ---------------------------------------------------------------------------
def _tiled_layer(a_p, h_in, w, b, *, n_pad, tm, k_tile, c_in_pad, c_out_pad,
                 out_dtype, epilogue, out_c, vmem_limit):
    # Largest k-tile that divides n_pad and keeps the per-step working set
    # (double-buffered A & H tiles + f32 accumulator) well inside 64 MiB VMEM.
    tk = min(k_tile, n_pad)

    def _step_bytes(tk_):
        return (2 * tm * tk_ * 2            # A tile, double-buffered, bf16
                + 2 * tk_ * c_in_pad * 2    # H tile, double-buffered, bf16
                + tm * c_in_pad * 4)        # f32 aggregation accumulator

    while tk > 128 and (n_pad % tk or _step_bytes(tk) > 24 * MIB):
        tk //= 2

    grid = (n_pad // tm, n_pad // tk)
    kernel = functools.partial(_gcn_layer_kernel,
                               apply_relu=(epilogue == "relu"),
                               final_log_softmax=(epilogue == "log_softmax"),
                               out_c=out_c)
    out_itemsize = 2 if out_dtype == jnp.bfloat16 else 4
    flops = 2 * n_pad * n_pad * c_in_pad + 2 * n_pad * c_in_pad * c_out_pad
    bytes_accessed = (n_pad * n_pad * 2                      # A, read once
                      + grid[0] * n_pad * c_in_pad * 2       # H, re-read per row tile
                      + c_in_pad * c_out_pad * 2             # W
                      + n_pad * c_out_pad * out_itemsize)    # output
    transcendentals = n_pad * c_out_pad if epilogue == "log_softmax" else 0

    return pl.pallas_call(
        kernel,
        out_shape=jax.ShapeDtypeStruct((n_pad, c_out_pad), out_dtype),
        grid=grid,
        in_specs=[
            # A tile: the only O(N^2) stream, auto double-buffered.
            pl.BlockSpec((tm, tk), lambda i, k: (i, k)),
            # Matching H rows for this contraction step.
            pl.BlockSpec((tk, c_in_pad), lambda i, k: (k, 0)),
            # W and bias are tiny (few tens of KiB) and grid-invariant; with
            # K-tiling their default double-buffering cost is negligible.
            pl.BlockSpec((c_in_pad, c_out_pad), lambda i, k: (0, 0)),
            pl.BlockSpec((1, c_out_pad), lambda i, k: (0, 0)),
        ],
        out_specs=pl.BlockSpec((tm, c_out_pad), lambda i, k: (i, 0)),
        scratch_shapes=[pltpu.VMEM((tm, c_in_pad), jnp.float32)],
        compiler_params=pltpu.CompilerParams(
            dimension_semantics=("parallel", "arbitrary"),   # megacore on rows
            vmem_limit_bytes=vmem_limit),
        cost_estimate=pl.CostEstimate(flops=flops,
                                      transcendentals=transcendentals,
                                      bytes_accessed=bytes_accessed),
    )(a_p, h_in, w, b)


def gcn_forward(a_hat, x, params, *, force_tiled=False,
                row_tile=ROW_TILE, k_tile=K_TILE):
    """Forward pass of the 3-layer GCN (eval mode)."""
    # TODO(synk): torch.nn.Dropout(p=0.2) is identity in eval mode; the
    # stochastic training-mode dropout is intentionally omitted.
    (w1, b1), (w2, b2), (w3, b3) = params
    n = x.shape[0]
    in_c, hid_c = w1.shape
    out_c = w3.shape[1]

    # Per-layer lane padding: (in_pad -> hid_pad), (hid -> hid), (hid -> out).
    in_pad = _round_up(in_c, LANES)
    hid_pad = _round_up(hid_c, LANES)
    out_pad = _round_up(out_c, LANES)

    vmem_limit = _pick_vmem_limit()

    w1p = _pad2d(w1, in_pad, hid_pad, jnp.bfloat16)
    w2p = _pad2d(w2, hid_pad, hid_pad, jnp.bfloat16)
    w3p = _pad2d(w3, hid_pad, out_pad, jnp.bfloat16)
    b1p = _pad2d(b1.reshape(1, -1), 1, hid_pad, jnp.float32)
    b2p = _pad2d(b2.reshape(1, -1), 1, hid_pad, jnp.float32)
    b3p = _pad2d(b3.reshape(1, -1), 1, out_pad, jnp.float32)

    # ---- fused path: A_hat resident in VMEM, streamed from HBM once --------
    n_pad_f = _round_up(n, LANES)
    fused_est = _fused_vmem_estimate(n_pad_f, in_pad, hid_pad, out_pad)
    if (not force_tiled
            and fused_est <= min(FUSED_VMEM_BUDGET, vmem_limit - 8 * MIB)):
        a_p = _pad2d(a_hat, n_pad_f, n_pad_f, jnp.bfloat16)
        x_p = _pad2d(x, n_pad_f, in_pad, jnp.bfloat16)
        # FLOP-optimal matmul order per layer (only relevant when channel
        # widths differ after padding; exact math is unchanged).
        transform_first = (in_pad > hid_pad, False, hid_pad > out_pad)
        agg_widths = (hid_pad if transform_first[0] else in_pad,
                      hid_pad,
                      out_pad if transform_first[2] else hid_pad)
        flops = (sum(2 * n_pad_f * n_pad_f * c for c in agg_widths)
                 + 2 * n_pad_f * (in_pad * hid_pad + hid_pad * hid_pad
                                  + hid_pad * out_pad))
        bytes_accessed = (n_pad_f * n_pad_f * 2 + n_pad_f * in_pad * 2
                          + n_pad_f * out_pad * 4
                          + (in_pad * hid_pad + hid_pad * hid_pad
                             + hid_pad * out_pad) * 2)
        out = pl.pallas_call(
            functools.partial(_gcn_fused_kernel, out_c=out_c,
                              transform_first=transform_first),
            out_shape=jax.ShapeDtypeStruct((n_pad_f, out_pad), jnp.float32),
            grid=(1,),
            in_specs=[
                pl.BlockSpec((n_pad_f, n_pad_f), lambda i: (0, 0)),   # A_hat
                pl.BlockSpec((n_pad_f, in_pad), lambda i: (0, 0)),    # X
                pl.BlockSpec((in_pad, hid_pad), lambda i: (0, 0)),    # W1
                pl.BlockSpec((1, hid_pad), lambda i: (0, 0)),         # b1
                pl.BlockSpec((hid_pad, hid_pad), lambda i: (0, 0)),   # W2
                pl.BlockSpec((1, hid_pad), lambda i: (0, 0)),         # b2
                pl.BlockSpec((hid_pad, out_pad), lambda i: (0, 0)),   # W3
                pl.BlockSpec((1, out_pad), lambda i: (0, 0)),         # b3
            ],
            out_specs=pl.BlockSpec((n_pad_f, out_pad), lambda i: (0, 0)),
            compiler_params=pltpu.CompilerParams(
                dimension_semantics=("arbitrary",),
                vmem_limit_bytes=vmem_limit),
            cost_estimate=pl.CostEstimate(flops=flops,
                                          transcendentals=n_pad_f * out_pad,
                                          bytes_accessed=bytes_accessed),
        )(a_p, x_p, w1p, b1p, w2p, b2p, w3p, b3p)
        return out[:n, :out_c]

    # ---- tiled path: K-tiled aggregation, N-independent VMEM footprint -----
    tm = row_tile
    n_pad = _round_up(n, tm)
    a_p = _pad2d(a_hat, n_pad, n_pad, jnp.bfloat16)
    h = _pad2d(x, n_pad, in_pad, jnp.bfloat16)

    h = _tiled_layer(a_p, h, w1p, b1p, n_pad=n_pad, tm=tm, k_tile=k_tile,
                     c_in_pad=in_pad, c_out_pad=hid_pad, out_dtype=jnp.bfloat16,
                     epilogue="relu", out_c=hid_c, vmem_limit=vmem_limit)
    h = _tiled_layer(a_p, h, w2p, b2p, n_pad=n_pad, tm=tm, k_tile=k_tile,
                     c_in_pad=hid_pad, c_out_pad=hid_pad, out_dtype=jnp.bfloat16,
                     epilogue="relu", out_c=hid_c, vmem_limit=vmem_limit)
    out = _tiled_layer(a_p, h, w3p, b3p, n_pad=n_pad, tm=tm, k_tile=k_tile,
                       c_in_pad=hid_pad, c_out_pad=out_pad, out_dtype=jnp.float32,
                       epilogue="log_softmax", out_c=out_c, vmem_limit=vmem_limit)
    return out[:n, :out_c]


# ---------------------------------------------------------------------------
# Glue (plain JAX): normalized adjacency, params, references
# ---------------------------------------------------------------------------
def build_norm_adj(edge_index, num_nodes):
    """Dense D^-1/2 (A + I) D^-1/2 matching GCNConv's gcn_norm."""
    src, dst = edge_index[0], edge_index[1]
    a = jnp.zeros((num_nodes, num_nodes), jnp.float32)
    a = a.at[dst, src].add(1.0)                 # duplicate edges accumulate (PyG parity)
    idx = jnp.arange(num_nodes)
    diag = a[idx, idx]
    a = a.at[idx, idx].add(jnp.where(diag == 0.0, 1.0, 0.0))  # add_remaining_self_loops
    deg = jnp.sum(a, axis=1)
    dinv = jnp.where(deg > 0, jax.lax.rsqrt(deg), 0.0)
    return a * dinv[:, None] * dinv[None, :]


def init_params(key, in_c, hid_c, out_c):
    """Deterministic glorot-style init (GCNConv weight (C_in,C_out) + bias)."""
    dims = [(in_c, hid_c), (hid_c, hid_c), (hid_c, out_c)]
    params = []
    for ci, co in dims:
        key, kw = jax.random.split(key)
        scale = jnp.sqrt(6.0 / (ci + co))
        w = jax.random.uniform(kw, (ci, co), jnp.float32, -scale, scale)
        b = jnp.zeros((1, co), jnp.float32)
        params.append((w, b))
    return params


def gcn_reference(a_hat, x, params):
    """Pure-JAX reference on the same bf16-operand / f32-accumulate path."""
    (w1, b1), (w2, b2), (w3, b3) = params
    a = a_hat.astype(jnp.bfloat16)

    def conv(h, w, b):
        agg = jnp.dot(a, h.astype(jnp.bfloat16),
                      preferred_element_type=jnp.float32)
        return jnp.dot(agg.astype(jnp.bfloat16), w.astype(jnp.bfloat16),
                       preferred_element_type=jnp.float32) + b

    h = jnp.maximum(conv(x, w1, b1), 0.0).astype(jnp.bfloat16)
    h = jnp.maximum(conv(h, w2, b2), 0.0).astype(jnp.bfloat16)
    h = conv(h, w3, b3)
    return jax.nn.log_softmax(h, axis=1)


def gcn_reference_f32(a_hat, x, params):
    """Full-precision reference (catches bf16-path precision drift)."""
    (w1, b1), (w2, b2), (w3, b3) = params
    h = jnp.maximum(a_hat @ x @ w1 + b1, 0.0)
    h = jnp.maximum(a_hat @ h @ w2 + b2, 0.0)
    h = a_hat @ h @ w3 + b3
    return jax.nn.log_softmax(h, axis=1)


if __name__ == "__main__":
    IN_C, HID_C, OUT_C = 8, 32, 8

    key = jax.random.PRNGKey(0)
    kx, kp = jax.random.split(key)
    params = init_params(kp, IN_C, HID_C, OUT_C)

    def ring_graph(n):
        src = jnp.arange(n, dtype=jnp.int32)
        dst = (src + 1) % n
        return jnp.concatenate(
            [jnp.stack([src, dst]), jnp.stack([dst, src])], axis=1)

    # Case 1: small graph -> fused single-pallas_call path (A_hat resident).
    N1 = 16
    x1 = jax.random.normal(kx, (N1, IN_C), jnp.float32)
    a1 = build_norm_adj(ring_graph(N1), N1)

    out1 = jax.block_until_ready(gcn_forward(a1, x1, params))
    ref1 = gcn_reference(a1, x1, params)
    ref1_f32 = gcn_reference_f32(a1, x1, params)
    assert out1.shape == (N1, OUT_C)
    assert jnp.allclose(out1, ref1, atol=2e-3, rtol=2e-3), \
        float(jnp.max(jnp.abs(out1 - ref1)))
    assert jnp.allclose(out1, ref1_f32, atol=5e-2, rtol=5e-2), \
        float(jnp.max(jnp.abs(out1 - ref1_f32)))

    # Case 2: force the K-tiled accumulation path with small tiles so the
    # multi-step accumulator / epilogue logic is exercised too.
    N2 = 200
    kx2, _ = jax.random.split(kx)
    x2 = jax.random.normal(kx2, (N2, IN_C), jnp.float32)
    a2 = build_norm_adj(ring_graph(N2), N2)

    out2 = jax.block_until_ready(
        gcn_forward(a2, x2, params, force_tiled=True, row_tile=128, k_tile=128))
    ref2 = gcn_reference(a2, x2, params)
    ref2_f32 = gcn_reference_f32(a2, x2, params)
    assert out2.shape == (N2, OUT_C)
    assert jnp.allclose(out2, ref2, atol=2e-3, rtol=2e-3), \
        float(jnp.max(jnp.abs(out2 - ref2)))
    assert jnp.allclose(out2, ref2_f32, atol=5e-2, rtol=5e-2), \
        float(jnp.max(jnp.abs(out2 - ref2_f32)))

    print("KERNEL_OK")
</pallas_src>

<mosaic_0001>
module attributes {stable_mosaic.version = 11 : i64} {
  func.func @_gcn_fused_kernel(%arg0: i32, %arg1: memref<128x128xbf16, #tpu.memory_space<vmem>>, %arg2: memref<128x128xbf16, #tpu.memory_space<vmem>>, %arg3: memref<128x128xbf16, #tpu.memory_space<vmem>>, %arg4: memref<1x128xf32, #tpu.memory_space<vmem>>, %arg5: memref<128x128xbf16, #tpu.memory_space<vmem>>, %arg6: memref<1x128xf32, #tpu.memory_space<vmem>>, %arg7: memref<128x128xbf16, #tpu.memory_space<vmem>>, %arg8: memref<1x128xf32, #tpu.memory_space<vmem>>, %arg9: memref<128x128xf32, #tpu.memory_space<vmem>>) attributes {dimension_semantics = [#tpu.dimension_semantics<arbitrary>], iteration_bounds = array<i64: 1>, scalar_prefetch = 0 : i64, scratch_operands = 0 : i64, tpu.core_type = #tpu.core_type<tc>, window_params = [{pipeline_mode = #tpu.pipeline_mode<synchronous>, transform_indices = @transform_0, window_bounds = array<i64: 128, 128>}, {pipeline_mode = #tpu.pipeline_mode<synchronous>, transform_indices = @transform_1, window_bounds = array<i64: 128, 128>}, {pipeline_mode = #tpu.pipeline_mode<synchronous>, transform_indices = @transform_2, window_bounds = array<i64: 128, 128>}, {pipeline_mode = #tpu.pipeline_mode<synchronous>, transform_indices = @transform_3, window_bounds = array<i64: 1, 128>}, {pipeline_mode = #tpu.pipeline_mode<synchronous>, transform_indices = @transform_4, window_bounds = array<i64: 128, 128>}, {pipeline_mode = #tpu.pipeline_mode<synchronous>, transform_indices = @transform_5, window_bounds = array<i64: 1, 128>}, {pipeline_mode = #tpu.pipeline_mode<synchronous>, transform_indices = @transform_6, window_bounds = array<i64: 128, 128>}, {pipeline_mode = #tpu.pipeline_mode<synchronous>, transform_indices = @transform_7, window_bounds = array<i64: 1, 128>}, {pipeline_mode = #tpu.pipeline_mode<synchronous>, transform_indices = @transform_8, window_bounds = array<i64: 128, 128>}]} {
    %c0 = arith.constant 0 : index
    %c0_0 = arith.constant 0 : index
    %0 = vector.load %arg1[%c0, %c0_0] : memref<128x128xbf16, #tpu.memory_space<vmem>>, vector<128x128xbf16>
    %c0_1 = arith.constant 0 : index
    %c0_2 = arith.constant 0 : index
    %1 = vector.load %arg2[%c0_1, %c0_2] : memref<128x128xbf16, #tpu.memory_space<vmem>>, vector<128x128xbf16>
    %cst = arith.constant dense<0.000000e+00> : vector<128x128xf32>
    %2 = tpu.matmul %0, %1, %cst {dimension_numbers = #tpu.dot_dimension_numbers<[1], [0], [0], [1], [0, 0, 1, 1], [], []>} : vector<128x128xbf16>, vector<128x128xbf16>, vector<128x128xf32> -> vector<128x128xf32>
    %3 = arith.truncf %2 : vector<128x128xf32> to vector<128x128xbf16>
    %c0_3 = arith.constant 0 : index
    %c0_4 = arith.constant 0 : index
    %4 = vector.load %arg3[%c0_3, %c0_4] : memref<128x128xbf16, #tpu.memory_space<vmem>>, vector<128x128xbf16>
    %cst_5 = arith.constant dense<0.000000e+00> : vector<128x128xf32>
    %5 = tpu.matmul %3, %4, %cst_5 {dimension_numbers = #tpu.dot_dimension_numbers<[1], [0], [0], [1], [0, 0, 1, 1], [], []>} : vector<128x128xbf16>, vector<128x128xbf16>, vector<128x128xf32> -> vector<128x128xf32>
    %c0_6 = arith.constant 0 : index
    %c0_7 = arith.constant 0 : index
    %6 = vector.load %arg4[%c0_6, %c0_7] : memref<1x128xf32, #tpu.memory_space<vmem>>, vector<1x128xf32>
    %7 = vector.broadcast %6 : vector<1x128xf32> to vector<128x128xf32>
    %8 = arith.addf %5, %7 : vector<128x128xf32>
    %cst_8 = arith.constant 0.000000e+00 : f32
    %9 = vector.broadcast %cst_8 : f32 to vector<128x128xf32>
    %10 = arith.maximumf %8, %9 : vector<128x128xf32>
    %11 = arith.truncf %10 : vector<128x128xf32> to vector<128x128xbf16>
    %cst_9 = arith.constant dense<0.000000e+00> : vector<128x128xf32>
    %12 = tpu.matmul %0, %11, %cst_9 {dimension_numbers = #tpu.dot_dimension_numbers<[1], [0], [0], [1], [0, 0, 1, 1], [], []>} : vector<128x128xbf16>, vector<128x128xbf16>, vector<128x128xf32> -> vector<128x128xf32>
    %13 = arith.truncf %12 : vector<128x128xf32> to vector<128x128xbf16>
    %c0_10 = arith.constant 0 : index
    %c0_11 = arith.constant 0 : index
    %14 = vector.load %arg5[%c0_10, %c0_11] : memref<128x128xbf16, #tpu.memory_space<vmem>>, vector<128x128xbf16>
    %cst_12 = arith.constant dense<0.000000e+00> : vector<128x128xf32>
    %15 = tpu.matmul %13, %14, %cst_12 {dimension_numbers = #tpu.dot_dimension_numbers<[1], [0], [0], [1], [0, 0, 1, 1], [], []>} : vector<128x128xbf16>, vector<128x128xbf16>, vector<128x128xf32> -> vector<128x128xf32>
    %c0_13 = arith.constant 0 : index
    %c0_14 = arith.constant 0 : index
    %16 = vector.load %arg6[%c0_13, %c0_14] : memref<1x128xf32, #tpu.memory_space<vmem>>, vector<1x128xf32>
    %17 = vector.broadcast %16 : vector<1x128xf32> to vector<128x128xf32>
    %18 = arith.addf %15, %17 : vector<128x128xf32>
    %cst_15 = arith.constant 0.000000e+00 : f32
    %19 = vector.broadcast %cst_15 : f32 to vector<128x128xf32>
    %20 = arith.maximumf %18, %19 : vector<128x128xf32>
    %21 = arith.truncf %20 : vector<128x128xf32> to vector<128x128xbf16>
    %cst_16 = arith.constant dense<0.000000e+00> : vector<128x128xf32>
    %22 = tpu.matmul %0, %21, %cst_16 {dimension_numbers = #tpu.dot_dimension_numbers<[1], [0], [0], [1], [0, 0, 1, 1], [], []>} : vector<128x128xbf16>, vector<128x128xbf16>, vector<128x128xf32> -> vector<128x128xf32>
    %23 = arith.truncf %22 : vector<128x128xf32> to vector<128x128xbf16>
    %c0_17 = arith.constant 0 : index
    %c0_18 = arith.constant 0 : index
    %24 = vector.load %arg7[%c0_17, %c0_18] : memref<128x128xbf16, #tpu.memory_space<vmem>>, vector<128x128xbf16>
    %cst_19 = arith.constant dense<0.000000e+00> : vector<128x128xf32>
    %25 = tpu.matmul %23, %24, %cst_19 {dimension_numbers = #tpu.dot_dimension_numbers<[1], [0], [0], [1], [0, 0, 1, 1], [], []>} : vector<128x128xbf16>, vector<128x128xbf16>, vector<128x128xf32> -> vector<128x128xf32>
    %c0_20 = arith.constant 0 : index
    %c0_21 = arith.constant 0 : index
    %26 = vector.load %arg8[%c0_20, %c0_21] : memref<1x128xf32, #tpu.memory_space<vmem>>, vector<1x128xf32>
    %27 = vector.broadcast %26 : vector<1x128xf32> to vector<128x128xf32>
    %28 = arith.addf %25, %27 : vector<128x128xf32>
    %29 = tpu.iota {dimensions = array<i32: 1>} : vector<128x128xi32>
    %c8_i32 = arith.constant 8 : i32
    %30 = vector.broadcast %c8_i32 : i32 to vector<128x128xi32>
    %31 = arith.cmpi slt, %29, %30 : vector<128x128xi32>
    %cst_22 = arith.constant 0xFF800000 : f32
    %32 = vector.broadcast %cst_22 : f32 to vector<128x128xf32>
    %33 = arith.select %31, %28, %32 : vector<128x128xi1>, vector<128x128xf32>
    %cst_23 = arith.constant dense<0xFF800000> : vector<128xf32>
    %34 = vector.multi_reduction <maximumf>, %33, %cst_23 [1] : vector<128x128xf32> to vector<128xf32>
    %35 = vector.shape_cast %34 : vector<128xf32> to vector<128x1xf32>
    %36 = vector.broadcast %35 : vector<128x1xf32> to vector<128x128xf32>
    %37 = arith.subf %33, %36 : vector<128x128xf32>
    %38 = math.exp %37 : vector<128x128xf32>
    %cst_24 = arith.constant dense<0.000000e+00> : vector<128xf32>
    %39 = vector.multi_reduction <add>, %38, %cst_24 [1] : vector<128x128xf32> to vector<128xf32>
    %40 = vector.shape_cast %39 : vector<128xf32> to vector<128x1xf32>
    %41 = math.log %40 : vector<128x1xf32>
    %42 = vector.broadcast %41 : vector<128x1xf32> to vector<128x128xf32>
    %43 = arith.subf %37, %42 : vector<128x128xf32>
    %cst_25 = arith.constant 0.000000e+00 : f32
    %44 = vector.broadcast %cst_25 : f32 to vector<128x128xf32>
    %45 = arith.select %31, %43, %44 : vector<128x128xi1>, vector<128x128xf32>
    %c0_26 = arith.constant 0 : index
    %c0_27 = arith.constant 0 : index
    %46 = vector.load %arg9[%c0_26, %c0_27] : memref<128x128xf32, #tpu.memory_space<vmem>>, vector<128x128xf32>
    tpu.vector_store %arg9[%c0_26, %c0_27], %45 {strides = array<i32>} : memref<128x128xf32, #tpu.memory_space<vmem>>, vector<128x128xf32>,
    return
  }
  func.func @transform_0(%arg0: i32) -> (i32, i32) {
    %c0_i32 = arith.constant 0 : i32
    %c0_i32_0 = arith.constant 0 : i32
    %c0_i32_1 = arith.constant 0 : i32
    return %c0_i32, %c0_i32_0 : i32, i32
  }
  func.func @transform_1(%arg0: i32) -> (i32, i32) {
    %c0_i32 = arith.constant 0 : i32
    %c0_i32_0 = arith.constant 0 : i32
    %c0_i32_1 = arith.constant 0 : i32
    return %c0_i32, %c0_i32_0 : i32, i32
  }
  func.func @transform_2(%arg0: i32) -> (i32, i32) {
    %c0_i32 = arith.constant 0 : i32
    %c0_i32_0 = arith.constant 0 : i32
    %c0_i32_1 = arith.constant 0 : i32
    return %c0_i32, %c0_i32_0 : i32, i32
  }
  func.func @transform_3(%arg0: i32) -> (i32, i32) {
    %c0_i32 = arith.constant 0 : i32
    %c0_i32_0 = arith.constant 0 : i32
    %c0_i32_1 = arith.constant 0 : i32
    return %c0_i32, %c0_i32_0 : i32, i32
  }
  func.func @transform_4(%arg0: i32) -> (i32, i32) {
    %c0_i32 = arith.constant 0 : i32
    %c0_i32_0 = arith.constant 0 : i32
    %c0_i32_1 = arith.constant 0 : i32
    return %c0_i32, %c0_i32_0 : i32, i32
  }
  func.func @transform_5(%arg0: i32) -> (i32, i32) {
    %c0_i32 = arith.constant 0 : i32
    %c0_i32_0 = arith.constant 0 : i32
    %c0_i32_1 = arith.constant 0 : i32
    return %c0_i32, %c0_i32_0 : i32, i32
  }
  func.func @transform_6(%arg0: i32) -> (i32, i32) {
    %c0_i32 = arith.constant 0 : i32
    %c0_i32_0 = arith.constant 0 : i32
    %c0_i32_1 = arith.constant 0 : i32
    return %c0_i32, %c0_i32_0 : i32, i32
  }
  func.func @transform_7(%arg0: i32) -> (i32, i32) {
    %c0_i32 = arith.constant 0 : i32
    %c0_i32_0 = arith.constant 0 : i32
    %c0_i32_1 = arith.constant 0 : i32
    return %c0_i32, %c0_i32_0 : i32, i32
  }
  func.func @transform_8(%arg0: i32) -> (i32, i32) {
    %c0_i32 = arith.constant 0 : i32
    %c0_i32_0 = arith.constant 0 : i32
    %c0_i32_1 = arith.constant 0 : i32
    return %c0_i32, %c0_i32_0 : i32, i32
  }
}

</mosaic_0001>

<llo_original>
// kernel: tpu_custom_call.1
$region0: #{tpu_custom_call.1}
  #allocation0 [shape = 'u32[]', space=smem, size = 0x4, offset = 0x4, fixed_abs, tag = 'smem constant byte address 0x4 - core index']
  #allocation1 [shape = 'u32[72,128]{1,0:T(1,128)}', space=vmem, size = 0x9000, scoped, tag = 'internal scratch']
  %s0 = inlined_call_operand.hbm [shape: bf16[128,128], index: 0, kind: input, shape index: {}]
  %s1 = inlined_call_operand.hbm [shape: bf16[128,128], index: 1, kind: input, shape index: {}]
  %s2 = inlined_call_operand.hbm [shape: bf16[128,128], index: 2, kind: input, shape index: {}]
  %s3 = inlined_call_operand.vmem [shape: f32[1,128], index: 3, kind: input, shape index: {}]
  %s4 = inlined_call_operand.hbm [shape: bf16[128,128], index: 4, kind: input, shape index: {}]
  %s5 = inlined_call_operand.vmem [shape: f32[1,128], index: 5, kind: input, shape index: {}]
  %s6 = inlined_call_operand.hbm [shape: bf16[128,128], index: 6, kind: input, shape index: {}]
  %s7 = inlined_call_operand.vmem [shape: f32[1,128], index: 7, kind: input, shape index: {}]
  %s8 = inlined_call_operand.hbm [shape: f32[128,128], index: 8, kind: output, shape index: {}]
  %s9 = sld [smem:[#allocation0]]
  $region62: #{tpu_custom_call.1} parent=0
    _
  %s11 = ssub.s32 1, %s9
  %s12 = scalar_select 0, %s11, %s9
  $region1: #{tpu_custom_call.1} parent=0
    #allocation2 [shape = 'u8[32768]{0}', space=vmem, size = 0x8000, scoped, tag = 'input window, operand 0, single buffered']
    #allocation3 [shape = 's32[1]{0}', space=sflag, size = 0x4, scoped, tag = 'scoped memory for tpu_custom_call.1']
    #allocation4 [shape = 's32[1]{0}', space=sflag, size = 0x4, scoped, tag = 'scoped memory for tpu_custom_call.1']
    #allocation5 [shape = 'u8[32768]{0}', space=vmem, size = 0x8000, scoped, tag = 'input window, operand 1, single buffered']
    #allocation6 [shape = 's32[1]{0}', space=sflag, size = 0x4, scoped, tag = 'scoped memory for tpu_custom_call.1']
    #allocation7 [shape = 'u8[32768]{0}', space=vmem, size = 0x8000, scoped, tag = 'input window, operand 2, single buffered']
    #allocation8 [shape = 'u8[32768]{0}', space=vmem, size = 0x8000, scoped, tag = 'input window, operand 4, single buffered']
    #allocation9 [shape = 's32[1]{0}', space=sflag, size = 0x4, scoped, tag = 'scoped memory for tpu_custom_call.1']
    #allocation10 [shape = 'u8[32768]{0}', space=vmem, size = 0x8000, scoped, tag = 'input window, operand 6, single buffered']
    #allocation11 [shape = 'u8[65536]{0}', space=vmem, size = 0x10000, scoped, tag = 'output window, operand 0, single buffered']
    %13 = vsyncpa [#allocation3], 0
    %14 = vsyncpa [#allocation6], 0
    %15 = vsyncpa [#allocation9], 0
    %16 = vsyncpa [#allocation4], 0
    // Predicated region
    $region2: #{tpu_custom_call.1} parent=1 // pred_check
      _
    $region3: #{tpu_custom_call.1} parent=1 // pred_check_branch
      %18 = sbr.rel (0) target = $region5
    $region4: #{tpu_custom_call.1} parent=1 // pred_region
      %20 = vsyncadd [#allocation3], 0
      %s21 = sshll.u32 %s0, 4
      %s22 = int_to_ptr.hbm [resolvable:$true] %s21
      %s23 = sshll.u32 [#allocation2], 4
      %s24 = int_to_ptr.vmem [resolvable:$true] %s23
      %29 = dma.hbm_to_vmem [thread:$0]  %s22, 1024, %s24, [#allocation3], 64, 64, 4
    $region5: #{tpu_custom_call.1} parent=1 // pred_fallthru
      _
    // Predicated region
    $region6: #{tpu_custom_call.1} parent=1 // pred_check
      _
    $region7: #{tpu_custom_call.1} parent=1 // pred_check_branch
      %31 = sbr.rel (0) target = $region9
    $region8: #{tpu_custom_call.1} parent=1 // pred_region
      %33 = vsyncadd [#allocation6], 0
      %s34 = sshll.u32 %s1, 4
      %s35 = int_to_ptr.hbm [resolvable:$true] %s34
      %s36 = sshll.u32 [#allocation5], 4
      %s37 = int_to_ptr.vmem [resolvable:$true] %s36
      %42 = dma.hbm_to_vmem [thread:$0]  %s35, 1024, %s37, [#allocation6], 64, 64, 4
    $region9: #{tpu_custom_call.1} parent=1 // pred_fallthru
      _
    // Predicated region
    $region10: #{tpu_custom_call.1} parent=1 // pred_check
      _
    $region11: #{tpu_custom_call.1} parent=1 // pred_check_branch
      %44 = sbr.rel (0) target = $region13
    $region12: #{tpu_custom_call.1} parent=1 // pred_region
      %46 = vsyncadd [#allocation6], 0
      %s47 = sshll.u32 %s2, 4
      %s48 = int_to_ptr.hbm [resolvable:$true] %s47
      %s49 = sshll.u32 [#allocation7], 4
      %s50 = int_to_ptr.vmem [resolvable:$true] %s49
      %55 = dma.hbm_to_vmem [thread:$0]  %s48, 1024, %s50, [#allocation6], 64, 64, 4
    $region13: #{tpu_custom_call.1} parent=1 // pred_fallthru
      _
    // Predicated region
    $region14: #{tpu_custom_call.1} parent=1 // pred_check
      _
    $region15: #{tpu_custom_call.1} parent=1 // pred_check_branch
      %57 = sbr.rel (0) target = $region17
    $region16: #{tpu_custom_call.1} parent=1 // pred_region
      _
    $region17: #{tpu_custom_call.1} parent=1 // pred_fallthru
      _
    // Predicated region
    $region18: #{tpu_custom_call.1} parent=1 // pred_check
      _
    $region19: #{tpu_custom_call.1} parent=1 // pred_check_branch
      %59 = sbr.rel (0) target = $region21
    $region20: #{tpu_custom_call.1} parent=1 // pred_region
      %61 = vsyncadd [#allocation9], 0
      %s62 = sshll.u32 %s4, 4
      %s63 = int_to_ptr.hbm [resolvable:$true] %s62
      %s64 = sshll.u32 [#allocation8], 4
      %s65 = int_to_ptr.vmem [resolvable:$true] %s64
      %70 = dma.hbm_to_vmem [thread:$0]  %s63, 1024, %s65, [#allocation9], 64, 64, 4
    $region21: #{tpu_custom_call.1} parent=1 // pred_fallthru
      _
    // Predicated region
    $region22: #{tpu_custom_call.1} parent=1 // pred_check
      _
    $region23: #{tpu_custom_call.1} parent=1 // pred_check_branch
      %72 = sbr.rel (0) target = $region25
    $region24: #{tpu_custom_call.1} parent=1 // pred_region
      _
    $region25: #{tpu_custom_call.1} parent=1 // pred_fallthru
      _
    // Predicated region
    $region26: #{tpu_custom_call.1} parent=1 // pred_check
      _
    $region27: #{tpu_custom_call.1} parent=1 // pred_check_branch
      %74 = sbr.rel (0) target = $region29
    $region28: #{tpu_custom_call.1} parent=1 // pred_region
      %76 = vsyncadd [#allocation9], 0
      %s77 = sshll.u32 %s6, 4
      %s78 = int_to_ptr.hbm [resolvable:$true] %s77
      %s79 = sshll.u32 [#allocation10], 4
      %s80 = int_to_ptr.vmem [resolvable:$true] %s79
      %85 = dma.hbm_to_vmem [thread:$0]  %s78, 1024, %s80, [#allocation9], 64, 64, 4
    $region29: #{tpu_custom_call.1} parent=1 // pred_fallthru
      _
    // Predicated region
    $region30: #{tpu_custom_call.1} parent=1 // pred_check
      _
    $region31: #{tpu_custom_call.1} parent=1 // pred_check_branch
      %87 = sbr.rel (0) target = $region33
    $region32: #{tpu_custom_call.1} parent=1 // pred_region
      _
    $region33: #{tpu_custom_call.1} parent=1 // pred_fallthru
      _
    // Predicated region
    $region34: #{tpu_custom_call.1} parent=1 // pred_check
      _
    $region35: #{tpu_custom_call.1} parent=1 // pred_check_branch
      %89 = sbr.rel (0) target = $region37
    $region36: #{tpu_custom_call.1} parent=1 // pred_region
      %91 = dma.done [#allocation3], 1024
    $region37: #{tpu_custom_call.1} parent=1 // pred_fallthru
      _
    // Predicated region
    $region38: #{tpu_custom_call.1} parent=1 // pred_check
      _
    $region39: #{tpu_custom_call.1} parent=1 // pred_check_branch
      %93 = sbr.rel (0) target = $region41
    $region40: #{tpu_custom_call.1} parent=1 // pred_region
      %95 = dma.done [#allocation6], 1024
    $region41: #{tpu_custom_call.1} parent=1 // pred_fallthru
      _
    // Predicated region
    $region42: #{tpu_custom_call.1} parent=1 // pred_check
      _
    $region43: #{tpu_custom_call.1} parent=1 // pred_check_branch
      %97 = sbr.rel (0) target = $region45
    $region44: #{tpu_custom_call.1} parent=1 // pred_region
      %99 = dma.done [#allocation6], 1024
    $region45: #{tpu_custom_call.1} parent=1 // pred_fallthru
      _
    // Predicated region
    $region46: #{tpu_custom_call.1} parent=1 // pred_check
      _
    $region47: #{tpu_custom_call.1} parent=1 // pred_check_branch
      %101 = sbr.rel (0) target = $region49
    $region48: #{tpu_custom_call.1} parent=1 // pred_region
      %103 = dma.done [#allocation9], 1024
    $region49: #{tpu_custom_call.1} parent=1 // pred_fallthru
      _
    // Predicated region
    $region50: #{tpu_custom_call.1} parent=1 // pred_check
      _
    $region51: #{tpu_custom_call.1} parent=1 // pred_check_branch
      %105 = sbr.rel (0) target = $region53
    $region52: #{tpu_custom_call.1} parent=1 // pred_region
      %107 = dma.done [#allocation9], 1024
    $region53: #{tpu_custom_call.1} parent=1 // pred_fallthru
      _
    %v108 = vld [vmem:[#allocation2] sm:$0xf]
    %v109 = vld [vmem:[#allocation2 + $0x4] sm:$0xf]
    %v110 = vld [vmem:[#allocation2 + $0x8] sm:$0xf]
    %v111 = vld [vmem:[#allocation2 + $0xc] sm:$0xf]
    %v112 = vld [vmem:[#allocation2 + $0x10] sm:$0xf]
    %v113 = vld [vmem:[#allocation2 + $0x14] sm:$0xf]
    %v114 = vld [vmem:[#allocation2 + $0x18] sm:$0xf]
    %v115 = vld [vmem:[#allocation2 + $0x1c] sm:$0xf]
    %v116 = vld [vmem:[#allocation2 + $0x20] sm:$0xf]
    %v117 = vld [vmem:[#allocation2 + $0x24] sm:$0xf]
    %v118 = vld [vmem:[#allocation2 + $0x28] sm:$0xf]
    %v119 = vld [vmem:[#allocation2 + $0x2c] sm:$0xf]
    %v120 = vld [vmem:[#allocation2 + $0x30] sm:$0xf]
    %v121 = vld [vmem:[#allocation2 + $0x34] sm:$0xf]
    %v122 = vld [vmem:[#allocation2 + $0x38] sm:$0xf]
    %v123 = vld [vmem:[#allocation2 + $0x3c] sm:$0xf]
    %v124 = vld [vmem:[#allocation5] sm:$0xf]
    %v125 = vld [vmem:[#allocation5 + $0x4] sm:$0xf]
    %v126 = vld [vmem:[#allocation5 + $0x8] sm:$0xf]
    %v127 = vld [vmem:[#allocation5 + $0xc] sm:$0xf]
    %v128 = vld [vmem:[#allocation5 + $0x10] sm:$0xf]
    %v129 = vld [vmem:[#allocation5 + $0x14] sm:$0xf]
    %v130 = vld [vmem:[#allocation5 + $0x18] sm:$0xf]
    %v131 = vld [vmem:[#allocation5 + $0x1c] sm:$0xf]
    %v132 = vld [vmem:[#allocation5 + $0x20] sm:$0xf]
    %v133 = vld [vmem:[#allocation5 + $0x24] sm:$0xf]
    %v134 = vld [vmem:[#allocation5 + $0x28] sm:$0xf]
    %v135 = vld [vmem:[#allocation5 + $0x2c] sm:$0xf]
    %v136 = vld [vmem:[#allocation5 + $0x30] sm:$0xf]
    %v137 = vld [vmem:[#allocation5 + $0x34] sm:$0xf]
    %v138 = vld [vmem:[#allocation5 + $0x38] sm:$0xf]
    %v139 = vld [vmem:[#allocation5 + $0x3c] sm:$0xf]
    %v156 = vunpack.c.l.b16 %v108
    %v157 = vunpack.c.l.b16 %v109
    %v158 = vunpack.c.l.b16 %v110
    %v159 = vunpack.c.l.b16 %v111
    %v160 = vunpack.c.l.b16 %v112
    %v161 = vunpack.c.l.b16 %v113
    %v162 = vunpack.c.l.b16 %v114
    %v163 = vunpack.c.l.b16 %v115
    %v164 = vunpack.c.l.b16 %v116
    %v165 = vunpack.c.l.b16 %v117
    %v166 = vunpack.c.l.b16 %v118
    %v167 = vunpack.c.l.b16 %v119
    %v168 = vunpack.c.l.b16 %v120
    %v169 = vunpack.c.l.b16 %v121
    %v170 = vunpack.c.l.b16 %v122
    %v171 = vunpack.c.l.b16 %v123
    %v172 = vpack.c.b16 %v157, %v156
    %v173 = vpack.c.b16 %v159, %v158
    %v174 = vpack.c.b16 %v161, %v160
    %v175 = vpack.c.b16 %v163, %v162
    %v176 = vpack.c.b16 %v165, %v164
    %v177 = vpack.c.b16 %v167, %v166
    %v178 = vpack.c.b16 %v169, %v168
    %v179 = vpack.c.b16 %v171, %v170
    %v204 = vunpack.c.l.b16 %v124
    %v205 = vunpack.c.l.b16 %v125
    %v206 = vunpack.c.l.b16 %v126
    %v207 = vunpack.c.l.b16 %v127
    %v208 = vunpack.c.l.b16 %v128
    %v209 = vunpack.c.l.b16 %v129
    %v210 = vunpack.c.l.b16 %v130
    %v211 = vunpack.c.l.b16 %v131
    %v212 = vunpack.c.l.b16 %v132
    %v213 = vunpack.c.l.b16 %v133
    %v214 = vunpack.c.l.b16 %v134
    %v215 = vunpack.c.l.b16 %v135
    %v216 = vunpack.c.l.b16 %v136
    %v217 = vunpack.c.l.b16 %v137
    %v218 = vunpack.c.l.b16 %v138
    %v219 = vunpack.c.l.b16 %v139
    %v220 = vpack.c.b16 %v205, %v204
    %v221 = vpack.c.b16 %v207, %v206
    %v222 = vpack.c.b16 %v209, %v208
    %v223 = vpack.c.b16 %v211, %v210
    %v224 = vpack.c.b16 %v213, %v212
    %v225 = vpack.c.b16 %v215, %v214
    %v226 = vpack.c.b16 %v217, %v216
    %v227 = vpack.c.b16 %v219, %v218
    %236 = vmatpush.bf16.msra.mxu0 %v227
    %237 = vmatpush.bf16.msra.mxu0 %v226
    %238 = vmatpush.bf16.msra.mxu0 %v225
    %239 = vmatpush.bf16.msra.mxu0 %v224
    %240 = vmatpush.bf16.msra.mxu0 %v223
    %241 = vmatpush.bf16.msra.mxu0 %v222
    %242 = vmatpush.bf16.msra.mxu0 %v221
    %243 = vmatpush.bf16.msra.mxu0 %v220
    %244 = vmatmul.bf16.gmra.mxu0 %v172
    %v245 = vpop.f32.mrf.mxu0
    %v246 = vadd.f32 0.0, %v245
    %v247 = vpop.f32.mrf.mxu0
    %v248 = vadd.f32 0.0, %v247
    %249 = vmatmul.bf16.gmra.mxu0 %v173
    %v250 = vpop.f32.mrf.mxu0
    %v251 = vadd.f32 0.0, %v250
    %v252 = vpop.f32.mrf.mxu0
    %v253 = vadd.f32 0.0, %v252
    %254 = vmatmul.bf16.gmra.mxu0 %v174
    %v255 = vpop.f32.mrf.mxu0
    %v256 = vadd.f32 0.0, %v255
    %v257 = vpop.f32.mrf.mxu0
    %v258 = vadd.f32 0.0, %v257
    %259 = vmatmul.bf16.gmra.mxu0 %v175
    %v260 = vpop.f32.mrf.mxu0
    %v261 = vadd.f32 0.0, %v260
    %v262 = vpop.f32.mrf.mxu0
    %v263 = vadd.f32 0.0, %v262
    %264 = vmatmul.bf16.gmra.mxu0 %v176
    %v265 = vpop.f32.mrf.mxu0
    %v266 = vadd.f32 0.0, %v265
    %v267 = vpop.f32.mrf.mxu0
    %v268 = vadd.f32 0.0, %v267
    %269 = vmatmul.bf16.gmra.mxu0 %v177
    %v270 = vpop.f32.mrf.mxu0
    %v271 = vadd.f32 0.0, %v270
    %v272 = vpop.f32.mrf.mxu0
    %v273 = vadd.f32 0.0, %v272
    %274 = vmatmul.bf16.gmra.mxu0 %v178
    %v275 = vpop.f32.mrf.mxu0
    %v276 = vadd.f32 0.0, %v275
    %v277 = vpop.f32.mrf.mxu0
    %v278 = vadd.f32 0.0, %v277
    %279 = vmatmul.bf16.gmra.mxu0 %v179
    %v280 = vpop.f32.mrf.mxu0
    %v281 = vadd.f32 0.0, %v280
    %v282 = vpop.f32.mrf.mxu0
    %v283 = vadd.f32 0.0, %v282
    %284 = vdwg.mxu0
    %v285 = vpack.c.bf16 %v248, %v246
    %v286 = vpack.c.bf16 %v253, %v251
    %v287 = vpack.c.bf16 %v258, %v256
    %v288 = vpack.c.bf16 %v263, %v261
    %v289 = vpack.c.bf16 %v268, %v266
    %v290 = vpack.c.bf16 %v273, %v271
    %v291 = vpack.c.bf16 %v278, %v276
    %v292 = vpack.c.bf16 %v283, %v281
    %v293 = vld [vmem:[#allocation7] sm:$0xf]
    %v294 = vld [vmem:[#allocation7 + $0x4] sm:$0xf]
    %v295 = vld [vmem:[#allocation7 + $0x8] sm:$0xf]
    %v296 = vld [vmem:[#allocation7 + $0xc] sm:$0xf]
    %v297 = vld [vmem:[#allocation7 + $0x10] sm:$0xf]
    %v298 = vld [vmem:[#allocation7 + $0x14] sm:$0xf]
    %v299 = vld [vmem:[#allocation7 + $0x18] sm:$0xf]
    %v300 = vld [vmem:[#allocation7 + $0x1c] sm:$0xf]
    %v301 = vld [vmem:[#allocation7 + $0x20] sm:$0xf]
    %v302 = vld [vmem:[#allocation7 + $0x24] sm:$0xf]
    %v303 = vld [vmem:[#allocation7 + $0x28] sm:$0xf]
    %v304 = vld [vmem:[#allocation7 + $0x2c] sm:$0xf]
    %v305 = vld [vmem:[#allocation7 + $0x30] sm:$0xf]
    %v306 = vld [vmem:[#allocation7 + $0x34] sm:$0xf]
    %v307 = vld [vmem:[#allocation7 + $0x38] sm:$0xf]
    %v308 = vld [vmem:[#allocation7 + $0x3c] sm:$0xf]
    %v309 = vld [vmem:[%s3] sm:$0x1]
    %v311 = vperm.slane %v309, 0
    %v329 = vunpack.c.l.b16 %v293
    %v330 = vunpack.c.l.b16 %v294
    %v331 = vunpack.c.l.b16 %v295
    %v332 = vunpack.c.l.b16 %v296
    %v333 = vunpack.c.l.b16 %v297
    %v334 = vunpack.c.l.b16 %v298
    %v335 = vunpack.c.l.b16 %v299
    %v336 = vunpack.c.l.b16 %v300
    %v337 = vunpack.c.l.b16 %v301
    %v338 = vunpack.c.l.b16 %v302
    %v339 = vunpack.c.l.b16 %v303
    %v340 = vunpack.c.l.b16 %v304
    %v341 = vunpack.c.l.b16 %v305
    %v342 = vunpack.c.l.b16 %v306
    %v343 = vunpack.c.l.b16 %v307
    %v344 = vunpack.c.l.b16 %v308
    %v345 = vpack.c.b16 %v330, %v329
    %v346 = vpack.c.b16 %v332, %v331
    %v347 = vpack.c.b16 %v334, %v333
    %v348 = vpack.c.b16 %v336, %v335
    %v349 = vpack.c.b16 %v338, %v337
    %v350 = vpack.c.b16 %v340, %v339
    %v351 = vpack.c.b16 %v342, %v341
    %v352 = vpack.c.b16 %v344, %v343
    %361 = vmatpush.bf16.msra.mxu0 %v352
    %362 = vmatpush.bf16.msra.mxu0 %v351
    %363 = vmatpush.bf16.msra.mxu0 %v350
    %364 = vmatpush.bf16.msra.mxu0 %v349
    %365 = vmatpush.bf16.msra.mxu0 %v348
    %366 = vmatpush.bf16.msra.mxu0 %v347
    %367 = vmatpush.bf16.msra.mxu0 %v346
    %368 = vmatpush.bf16.msra.mxu0 %v345
    %369 = vmatmul.bf16.gmra.mxu0 %v285
    %v370 = vpop.f32.mrf.mxu0
    %v371 = vadd.f32 %v311, %v370
    %v372 = vpop.f32.mrf.mxu0
    %v373 = vadd.f32 %v311, %v372
    %374 = vmatmul.bf16.gmra.mxu0 %v286
    %v375 = vpop.f32.mrf.mxu0
    %v376 = vadd.f32 %v311, %v375
    %v377 = vpop.f32.mrf.mxu0
    %v378 = vadd.f32 %v311, %v377
    %379 = vmatmul.bf16.gmra.mxu0 %v287
    %v380 = vpop.f32.mrf.mxu0
    %v381 = vadd.f32 %v311, %v380
    %v382 = vpop.f32.mrf.mxu0
    %v383 = vadd.f32 %v311, %v382
    %384 = vmatmul.bf16.gmra.mxu0 %v288
    %v385 = vpop.f32.mrf.mxu0
    %v386 = vadd.f32 %v311, %v385
    %v387 = vpop.f32.mrf.mxu0
    %v388 = vadd.f32 %v311, %v387
    %389 = vmatmul.bf16.gmra.mxu0 %v289
    %v390 = vpop.f32.mrf.mxu0
    %v391 = vadd.f32 %v311, %v390
    %v392 = vpop.f32.mrf.mxu0
    %v393 = vadd.f32 %v311, %v392
    %394 = vmatmul.bf16.gmra.mxu0 %v290
    %v395 = vpop.f32.mrf.mxu0
    %v396 = vadd.f32 %v311, %v395
    %v397 = vpop.f32.mrf.mxu0
    %v398 = vadd.f32 %v311, %v397
    %399 = vmatmul.bf16.gmra.mxu0 %v291
    %v400 = vpop.f32.mrf.mxu0
    %v401 = vadd.f32 %v311, %v400
    %v402 = vpop.f32.mrf.mxu0
    %v403 = vadd.f32 %v311, %v402
    %404 = vmatmul.bf16.gmra.mxu0 %v292
    %v405 = vpop.f32.mrf.mxu0
    %v406 = vadd.f32 %v311, %v405
    %v407 = vpop.f32.mrf.mxu0
    %v408 = vadd.f32 %v311, %v407
    %409 = vdwg.mxu0
    %v410 = vmax.f32 %v371, 0.0
    %v411 = vmax.f32 %v373, 0.0
    %v412 = vmax.f32 %v376, 0.0
    %v413 = vmax.f32 %v378, 0.0
    %v414 = vmax.f32 %v381, 0.0
    %v415 = vmax.f32 %v383, 0.0
    %v416 = vmax.f32 %v386, 0.0
    %v417 = vmax.f32 %v388, 0.0
    %v418 = vmax.f32 %v391, 0.0
    %v419 = vmax.f32 %v393, 0.0
    %v420 = vmax.f32 %v396, 0.0
    %v421 = vmax.f32 %v398, 0.0
    %v422 = vmax.f32 %v401, 0.0
    %v423 = vmax.f32 %v403, 0.0
    %v424 = vmax.f32 %v406, 0.0
    %v425 = vmax.f32 %v408, 0.0
    %v426 = vpack.c.bf16 %v411, %v410
    %v427 = vpack.c.bf16 %v413, %v412
    %v428 = vpack.c.bf16 %v415, %v414
    %v429 = vpack.c.bf16 %v417, %v416
    %v430 = vpack.c.bf16 %v419, %v418
    %v431 = vpack.c.bf16 %v421, %v420
    %v432 = vpack.c.bf16 %v423, %v422
    %v433 = vpack.c.bf16 %v425, %v424
    %434 = vmatpush.bf16.msra.mxu0 %v433
    %435 = vmatpush.bf16.msra.mxu0 %v432
    %436 = vmatpush.bf16.msra.mxu0 %v431
    %437 = vmatpush.bf16.msra.mxu0 %v430
    %438 = vmatpush.bf16.msra.mxu0 %v429
    %439 = vmatpush.bf16.msra.mxu0 %v428
    %440 = vmatpush.bf16.msra.mxu0 %v427
    %441 = vmatpush.bf16.msra.mxu0 %v426
    %442 = vmatmul.bf16.gmra.mxu0 %v172
    %v443 = vpop.f32.mrf.mxu0
    %v444 = vadd.f32 0.0, %v443
    %v445 = vpop.f32.mrf.mxu0
    %v446 = vadd.f32 0.0, %v445
    %447 = vmatmul.bf16.gmra.mxu0 %v173
    %v448 = vpop.f32.mrf.mxu0
    %v449 = vadd.f32 0.0, %v448
    %v450 = vpop.f32.mrf.mxu0
    %v451 = vadd.f32 0.0, %v450
    %452 = vmatmul.bf16.gmra.mxu0 %v174
    %v453 = vpop.f32.mrf.mxu0
    %v454 = vadd.f32 0.0, %v453
    %v455 = vpop.f32.mrf.mxu0
    %v456 = vadd.f32 0.0, %v455
    %457 = vmatmul.bf16.gmra.mxu0 %v175
    %v458 = vpop.f32.mrf.mxu0
    %v459 = vadd.f32 0.0, %v458
    %v460 = vpop.f32.mrf.mxu0
    %v461 = vadd.f32 0.0, %v460
    %462 = vmatmul.bf16.gmra.mxu0 %v176
    %v463 = vpop.f32.mrf.mxu0
    %v464 = vadd.f32 0.0, %v463
    %v465 = vpop.f32.mrf.mxu0
    %v466 = vadd.f32 0.0, %v465
    %467 = vmatmul.bf16.gmra.mxu0 %v177
    %v468 = vpop.f32.mrf.mxu0
    %v469 = vadd.f32 0.0, %v468
    %v470 = vpop.f32.mrf.mxu0
    %v471 = vadd.f32 0.0, %v470
    %472 = vmatmul.bf16.gmra.mxu0 %v178
    %v473 = vpop.f32.mrf.mxu0
    %v474 = vadd.f32 0.0, %v473
    %v475 = vpop.f32.mrf.mxu0
    %v476 = vadd.f32 0.0, %v475
    %477 = vmatmul.bf16.gmra.mxu0 %v179
    %v478 = vpop.f32.mrf.mxu0
    %v479 = vadd.f32 0.0, %v478
    %v480 = vpop.f32.mrf.mxu0
    %v481 = vadd.f32 0.0, %v480
    %482 = vdwg.mxu0
    %v483 = vpack.c.bf16 %v446, %v444
    %v484 = vpack.c.bf16 %v451, %v449
    %v485 = vpack.c.bf16 %v456, %v454
    %v486 = vpack.c.bf16 %v461, %v459
    %v487 = vpack.c.bf16 %v466, %v464
    %v488 = vpack.c.bf16 %v471, %v469
    %v489 = vpack.c.bf16 %v476, %v474
    %v490 = vpack.c.bf16 %v481, %v479
    %v491 = vld [vmem:[#allocation8] sm:$0xf]
    %v492 = vld [vmem:[#allocation8 + $0x4] sm:$0xf]
    %v493 = vld [vmem:[#allocation8 + $0x8] sm:$0xf]
    %v494 = vld [vmem:[#allocation8 + $0xc] sm:$0xf]
    %v495 = vld [vmem:[#allocation8 + $0x10] sm:$0xf]
    %v496 = vld [vmem:[#allocation8 + $0x14] sm:$0xf]
    %v497 = vld [vmem:[#allocation8 + $0x18] sm:$0xf]
    %v498 = vld [vmem:[#allocation8 + $0x1c] sm:$0xf]
    %v499 = vld [vmem:[#allocation8 + $0x20] sm:$0xf]
    %v500 = vld [vmem:[#allocation8 + $0x24] sm:$0xf]
    %v501 = vld [vmem:[#allocation8 + $0x28] sm:$0xf]
    %v502 = vld [vmem:[#allocation8 + $0x2c] sm:$0xf]
    %v503 = vld [vmem:[#allocation8 + $0x30] sm:$0xf]
    %v504 = vld [vmem:[#allocation8 + $0x34] sm:$0xf]
    %v505 = vld [vmem:[#allocation8 + $0x38] sm:$0xf]
    %v506 = vld [vmem:[#allocation8 + $0x3c] sm:$0xf]
    %v507 = vld [vmem:[%s5] sm:$0x1]
    %v509 = vperm.slane %v507, 0
    %v527 = vunpack.c.l.b16 %v491
    %v528 = vunpack.c.l.b16 %v492
    %v529 = vunpack.c.l.b16 %v493
    %v530 = vunpack.c.l.b16 %v494
    %v531 = vunpack.c.l.b16 %v495
    %v532 = vunpack.c.l.b16 %v496
    %v533 = vunpack.c.l.b16 %v497
    %v534 = vunpack.c.l.b16 %v498
    %v535 = vunpack.c.l.b16 %v499
    %v536 = vunpack.c.l.b16 %v500
    %v537 = vunpack.c.l.b16 %v501
    %v538 = vunpack.c.l.b16 %v502
    %v539 = vunpack.c.l.b16 %v503
    %v540 = vunpack.c.l.b16 %v504
    %v541 = vunpack.c.l.b16 %v505
    %v542 = vunpack.c.l.b16 %v506
    %v543 = vpack.c.b16 %v528, %v527
    %v544 = vpack.c.b16 %v530, %v529
    %v545 = vpack.c.b16 %v532, %v531
    %v546 = vpack.c.b16 %v534, %v533
    %v547 = vpack.c.b16 %v536, %v535
    %v548 = vpack.c.b16 %v538, %v537
    %v549 = vpack.c.b16 %v540, %v539
    %v550 = vpack.c.b16 %v542, %v541
    %559 = vmatpush.bf16.msra.mxu0 %v550
    %560 = vmatpush.bf16.msra.mxu0 %v549
    %561 = vmatpush.bf16.msra.mxu0 %v548
    %562 = vmatpush.bf16.msra.mxu0 %v547
    %563 = vmatpush.bf16.msra.mxu0 %v546
    %564 = vmatpush.bf16.msra.mxu0 %v545
    %565 = vmatpush.bf16.msra.mxu0 %v544
    %566 = vmatpush.bf16.msra.mxu0 %v543
    %567 = vmatmul.bf16.gmra.mxu0 %v483
    %v568 = vpop.f32.mrf.mxu0
    %v569 = vadd.f32 %v509, %v568
    %v570 = vpop.f32.mrf.mxu0
    %v571 = vadd.f32 %v509, %v570
    %572 = vmatmul.bf16.gmra.mxu0 %v484
    %v573 = vpop.f32.mrf.mxu0
    %v574 = vadd.f32 %v509, %v573
    %v575 = vpop.f32.mrf.mxu0
    %v576 = vadd.f32 %v509, %v575
    %577 = vmatmul.bf16.gmra.mxu0 %v485
    %v578 = vpop.f32.mrf.mxu0
    %v579 = vadd.f32 %v509, %v578
    %v580 = vpop.f32.mrf.mxu0
    %v581 = vadd.f32 %v509, %v580
    %582 = vmatmul.bf16.gmra.mxu0 %v486
    %v583 = vpop.f32.mrf.mxu0
    %v584 = vadd.f32 %v509, %v583
    %v585 = vpop.f32.mrf.mxu0
    %v586 = vadd.f32 %v509, %v585
    %587 = vmatmul.bf16.gmra.mxu0 %v487
    %v588 = vpop.f32.mrf.mxu0
    %v589 = vadd.f32 %v509, %v588
    %v590 = vpop.f32.mrf.mxu0
    %v591 = vadd.f32 %v509, %v590
    %592 = vmatmul.bf16.gmra.mxu0 %v488
    %v593 = vpop.f32.mrf.mxu0
    %v594 = vadd.f32 %v509, %v593
    %v595 = vpop.f32.mrf.mxu0
    %v596 = vadd.f32 %v509, %v595
    %597 = vmatmul.bf16.gmra.mxu0 %v489
    %v598 = vpop.f32.mrf.mxu0
    %v599 = vadd.f32 %v509, %v598
    %v600 = vpop.f32.mrf.mxu0
    %v601 = vadd.f32 %v509, %v600
    %602 = vmatmul.bf16.gmra.mxu0 %v490
    %v603 = vpop.f32.mrf.mxu0
    %v604 = vadd.f32 %v509, %v603
    %v605 = vpop.f32.mrf.mxu0
    %v606 = vadd.f32 %v509, %v605
    %607 = vdwg.mxu0
    %v608 = vmax.f32 %v569, 0.0
    %v609 = vmax.f32 %v571, 0.0
    %v610 = vmax.f32 %v574, 0.0
    %v611 = vmax.f32 %v576, 0.0
    %v612 = vmax.f32 %v579, 0.0
    %v613 = vmax.f32 %v581, 0.0
    %v614 = vmax.f32 %v584, 0.0
    %v615 = vmax.f32 %v586, 0.0
    %v616 = vmax.f32 %v589, 0.0
    %v617 = vmax.f32 %v591, 0.0
    %v618 = vmax.f32 %v594, 0.0
    %v619 = vmax.f32 %v596, 0.0
    %v620 = vmax.f32 %v599, 0.0
    %v621 = vmax.f32 %v601, 0.0
    %v622 = vmax.f32 %v604, 0.0
    %v623 = vmax.f32 %v606, 0.0
    %v624 = vpack.c.bf16 %v609, %v608
    %v625 = vpack.c.bf16 %v611, %v610
    %v626 = vpack.c.bf16 %v613, %v612
    %v627 = vpack.c.bf16 %v615, %v614
    %v628 = vpack.c.bf16 %v617, %v616
    %v629 = vpack.c.bf16 %v619, %v618
    %v630 = vpack.c.bf16 %v621, %v620
    %v631 = vpack.c.bf16 %v623, %v622
    %632 = vmatpush.bf16.msra.mxu0 %v631
    %633 = vmatpush.bf16.msra.mxu0 %v630
    %634 = vmatpush.bf16.msra.mxu0 %v629
    %635 = vmatpush.bf16.msra.mxu0 %v628
    %636 = vmatpush.bf16.msra.mxu0 %v627
    %637 = vmatpush.bf16.msra.mxu0 %v626
    %638 = vmatpush.bf16.msra.mxu0 %v625
    %639 = vmatpush.bf16.msra.mxu0 %v624
    %640 = vmatmul.bf16.gmra.mxu0 %v172
    %v641 = vpop.f32.mrf.mxu0
    %v642 = vadd.f32 0.0, %v641
    %v643 = vpop.f32.mrf.mxu0
    %v644 = vadd.f32 0.0, %v643
    %645 = vmatmul.bf16.gmra.mxu0 %v173
    %v646 = vpop.f32.mrf.mxu0
    %v647 = vadd.f32 0.0, %v646
    %v648 = vpop.f32.mrf.mxu0
    %v649 = vadd.f32 0.0, %v648
    %650 = vmatmul.bf16.gmra.mxu0 %v174
    %v651 = vpop.f32.mrf.mxu0
    %v652 = vadd.f32 0.0, %v651
    %v653 = vpop.f32.mrf.mxu0
    %v654 = vadd.f32 0.0, %v653
    %655 = vmatmul.bf16.gmra.mxu0 %v175
    %v656 = vpop.f32.mrf.mxu0
    %v657 = vadd.f32 0.0, %v656
    %v658 = vpop.f32.mrf.mxu0
    %v659 = vadd.f32 0.0, %v658
    %660 = vmatmul.bf16.gmra.mxu0 %v176
    %v661 = vpop.f32.mrf.mxu0
    %v662 = vadd.f32 0.0, %v661
    %v663 = vpop.f32.mrf.mxu0
    %v664 = vadd.f32 0.0, %v663
    %665 = vmatmul.bf16.gmra.mxu0 %v177
    %v666 = vpop.f32.mrf.mxu0
    %v667 = vadd.f32 0.0, %v666
    %v668 = vpop.f32.mrf.mxu0
    %v669 = vadd.f32 0.0, %v668
    %670 = vmatmul.bf16.gmra.mxu0 %v178
    %v671 = vpop.f32.mrf.mxu0
    %v672 = vadd.f32 0.0, %v671
    %v673 = vpop.f32.mrf.mxu0
    %v674 = vadd.f32 0.0, %v673
    %675 = vmatmul.bf16.gmra.mxu0 %v179
    %v676 = vpop.f32.mrf.mxu0
    %v677 = vadd.f32 0.0, %v676
    %v678 = vpop.f32.mrf.mxu0
    %v679 = vadd.f32 0.0, %v678
    %680 = vdwg.mxu0
    %v681 = vpack.c.bf16 %v644, %v642
    %v682 = vpack.c.bf16 %v649, %v647
    %v683 = vpack.c.bf16 %v654, %v652
    %v684 = vpack.c.bf16 %v659, %v657
    %v685 = vpack.c.bf16 %v664, %v662
    %v686 = vpack.c.bf16 %v669, %v667
    %v687 = vpack.c.bf16 %v674, %v672
    %v688 = vpack.c.bf16 %v679, %v677
    %v689 = vld [vmem:[#allocation10] sm:$0xf]
    %v690 = vld [vmem:[#allocation10 + $0x4] sm:$0xf]
    %v691 = vld [vmem:[#allocation10 + $0x8] sm:$0xf]
    %v692 = vld [vmem:[#allocation10 + $0xc] sm:$0xf]
    %v693 = vld [vmem:[#allocation10 + $0x10] sm:$0xf]
    %v694 = vld [vmem:[#allocation10 + $0x14] sm:$0xf]
    %v695 = vld [vmem:[#allocation10 + $0x18] sm:$0xf]
    %v696 = vld [vmem:[#allocation10 + $0x1c] sm:$0xf]
    %v697 = vld [vmem:[#allocation10 + $0x20] sm:$0xf]
    %v698 = vld [vmem:[#allocation10 + $0x24] sm:$0xf]
    %v699 = vld [vmem:[#allocation10 + $0x28] sm:$0xf]
    %v700 = vld [vmem:[#allocation10 + $0x2c] sm:$0xf]
    %v701 = vld [vmem:[#allocation10 + $0x30] sm:$0xf]
    %v702 = vld [vmem:[#allocation10 + $0x34] sm:$0xf]
    %v703 = vld [vmem:[#allocation10 + $0x38] sm:$0xf]
    %v704 = vld [vmem:[#allocation10 + $0x3c] sm:$0xf]
    %v705 = vld [vmem:[%s7] sm:$0x1]
    %v707 = vperm.slane %v705, 0
    %v725 = vunpack.c.l.b16 %v689
    %v726 = vunpack.c.l.b16 %v690
    %v727 = vunpack.c.l.b16 %v691
    %v728 = vunpack.c.l.b16 %v692
    %v729 = vunpack.c.l.b16 %v693
    %v730 = vunpack.c.l.b16 %v694
    %v731 = vunpack.c.l.b16 %v695
    %v732 = vunpack.c.l.b16 %v696
    %v733 = vunpack.c.l.b16 %v697
    %v734 = vunpack.c.l.b16 %v698
    %v735 = vunpack.c.l.b16 %v699
    %v736 = vunpack.c.l.b16 %v700
    %v737 = vunpack.c.l.b16 %v701
    %v738 = vunpack.c.l.b16 %v702
    %v739 = vunpack.c.l.b16 %v703
    %v740 = vunpack.c.l.b16 %v704
    %v741 = vpack.c.b16 %v726, %v725
    %v742 = vpack.c.b16 %v728, %v727
    %v743 = vpack.c.b16 %v730, %v729
    %v744 = vpack.c.b16 %v732, %v731
    %v745 = vpack.c.b16 %v734, %v733
    %v746 = vpack.c.b16 %v736, %v735
    %v747 = vpack.c.b16 %v738, %v737
    %v748 = vpack.c.b16 %v740, %v739
    %757 = vmatpush.bf16.msra.mxu0 %v748
    %758 = vmatpush.bf16.msra.mxu0 %v747
    %759 = vmatpush.bf16.msra.mxu0 %v746
    %760 = vmatpush.bf16.msra.mxu0 %v745
    %761 = vmatpush.bf16.msra.mxu0 %v744
    %762 = vmatpush.bf16.msra.mxu0 %v743
    %763 = vmatpush.bf16.msra.mxu0 %v742
    %764 = vmatpush.bf16.msra.mxu0 %v741
    %765 = vmatmul.bf16.gmra.mxu0 %v681
    %v766 = vpop.f32.mrf.mxu0
    %v767 = vadd.f32 %v707, %v766
    %v768 = vpop.f32.mrf.mxu0
    %v769 = vadd.f32 %v707, %v768
    %770 = vmatmul.bf16.gmra.mxu0 %v682
    %v771 = vpop.f32.mrf.mxu0
    %v772 = vadd.f32 %v707, %v771
    %v773 = vpop.f32.mrf.mxu0
    %v774 = vadd.f32 %v707, %v773
    %775 = vmatmul.bf16.gmra.mxu0 %v683
    %v776 = vpop.f32.mrf.mxu0
    %v777 = vadd.f32 %v707, %v776
    %v778 = vpop.f32.mrf.mxu0
    %v779 = vadd.f32 %v707, %v778
    %780 = vmatmul.bf16.gmra.mxu0 %v684
    %v781 = vpop.f32.mrf.mxu0
    %v782 = vadd.f32 %v707, %v781
    %v783 = vpop.f32.mrf.mxu0
    %v784 = vadd.f32 %v707, %v783
    %785 = vmatmul.bf16.gmra.mxu0 %v685
    %v786 = vpop.f32.mrf.mxu0
    %v787 = vadd.f32 %v707, %v786
    %v788 = vpop.f32.mrf.mxu0
    %v789 = vadd.f32 %v707, %v788
    %790 = vmatmul.bf16.gmra.mxu0 %v686
    %v791 = vpop.f32.mrf.mxu0
    %v792 = vadd.f32 %v707, %v791
    %v793 = vpop.f32.mrf.mxu0
    %v794 = vadd.f32 %v707, %v793
    %795 = vmatmul.bf16.gmra.mxu0 %v687
    %v796 = vpop.f32.mrf.mxu0
    %v797 = vadd.f32 %v707, %v796
    %v798 = vpop.f32.mrf.mxu0
    %v799 = vadd.f32 %v707, %v798
    %800 = vmatmul.bf16.gmra.mxu0 %v688
    %v801 = vpop.f32.mrf.mxu0
    %v802 = vadd.f32 %v707, %v801
    %v803 = vpop.f32.mrf.mxu0
    %v804 = vadd.f32 %v707, %v803
    %805 = vdwg.mxu0
    %v806 = vlaneseq
    %v807 = vand.u32 %v806, 127
    %vm808 = vcmp.lt.s32.totalorder %v807, 8
    %v809 = vsel %vm808, %v767, -inf
    %v810 = vsel %vm808, %v769, -inf
    %v811 = vsel %vm808, %v772, -inf
    %v812 = vsel %vm808, %v774, -inf
    %v813 = vsel %vm808, %v777, -inf
    %v814 = vsel %vm808, %v779, -inf
    %v815 = vsel %vm808, %v782, -inf
    %v816 = vsel %vm808, %v784, -inf
    %v817 = vsel %vm808, %v787, -inf
    %v818 = vsel %vm808, %v789, -inf
    %v819 = vsel %vm808, %v792, -inf
    %v820 = vsel %vm808, %v794, -inf
    %v821 = vsel %vm808, %v797, -inf
    %v822 = vsel %vm808, %v799, -inf
    %v823 = vsel %vm808, %v802, -inf
    %v824 = vsel %vm808, %v804, -inf
    %825 = vmax.xlane.f32.xlu0 %v809
    %v826 = vpop.xlane.xlu0 %825
    %827 = vmax.xlane.f32.xlu0 %v810
    %v828 = vpop.xlane.xlu0 %827
    %829 = vmax.xlane.f32.xlu0 %v811
    %v830 = vpop.xlane.xlu0 %829
    %831 = vmax.xlane.f32.xlu0 %v812
    %v832 = vpop.xlane.xlu0 %831
    %833 = vmax.xlane.f32.xlu0 %v813
    %v834 = vpop.xlane.xlu0 %833
    %835 = vmax.xlane.f32.xlu0 %v814
    %v836 = vpop.xlane.xlu0 %835
    %837 = vmax.xlane.f32.xlu0 %v815
    %v838 = vpop.xlane.xlu0 %837
    %839 = vmax.xlane.f32.xlu0 %v816
    %v840 = vpop.xlane.xlu0 %839
    %841 = vmax.xlane.f32.xlu0 %v817
    %v842 = vpop.xlane.xlu0 %841
    %843 = vmax.xlane.f32.xlu0 %v818
    %v844 = vpop.xlane.xlu0 %843
    %845 = vmax.xlane.f32.xlu0 %v819
    %v846 = vpop.xlane.xlu0 %845
    %847 = vmax.xlane.f32.xlu0 %v820
    %v848 = vpop.xlane.xlu0 %847
    %849 = vmax.xlane.f32.xlu0 %v821
    %v850 = vpop.xlane.xlu0 %849
    %851 = vmax.xlane.f32.xlu0 %v822
    %v852 = vpop.xlane.xlu0 %851
    %853 = vmax.xlane.f32.xlu0 %v823
    %v854 = vpop.xlane.xlu0 %853
    %855 = vmax.xlane.f32.xlu0 %v824
    %v856 = vpop.xlane.xlu0 %855
    %v857 = vsub.f32 %v809, %v826
    %v858 = vsub.f32 %v810, %v828
    %v859 = vsub.f32 %v811, %v830
    %v860 = vsub.f32 %v812, %v832
    %v861 = vsub.f32 %v813, %v834
    %v862 = vsub.f32 %v814, %v836
    %v863 = vsub.f32 %v815, %v838
    %v864 = vsub.f32 %v816, %v840
    %v865 = vsub.f32 %v817, %v842
    %v866 = vsub.f32 %v818, %v844
    %v867 = vsub.f32 %v819, %v846
    %v868 = vsub.f32 %v820, %v848
    %v869 = vsub.f32 %v821, %v850
    %v870 = vsub.f32 %v822, %v852
    %v871 = vsub.f32 %v823, %v854
    %v872 = vsub.f32 %v824, %v856
    %v873 = vmul.f32 %v857, 1.442695
    %v874 = vpow.pop %v873
    %v875 = vmul.f32 %v858, 1.442695
    %v876 = vpow.pop %v875
    %v877 = vmul.f32 %v859, 1.442695
    %v878 = vpow.pop %v877
    %v879 = vmul.f32 %v860, 1.442695
    %v880 = vpow.pop %v879
    %v881 = vmul.f32 %v861, 1.442695
    %v882 = vpow.pop %v881
    %v883 = vmul.f32 %v862, 1.442695
    %v884 = vpow.pop %v883
    %v885 = vmul.f32 %v863, 1.442695
    %v886 = vpow.pop %v885
    %v887 = vmul.f32 %v864, 1.442695
    %v888 = vpow.pop %v887
    %v889 = vmul.f32 %v865, 1.442695
    %v890 = vpow.pop %v889
    %v891 = vmul.f32 %v866, 1.442695
    %v892 = vpow.pop %v891
    %v893 = vmul.f32 %v867, 1.442695
    %v894 = vpow.pop %v893
    %v895 = vmul.f32 %v868, 1.442695
    %v896 = vpow.pop %v895
    %v897 = vmul.f32 %v869, 1.442695
    %v898 = vpow.pop %v897
    %v899 = vmul.f32 %v870, 1.442695
    %v900 = vpow.pop %v899
    %v901 = vmul.f32 %v871, 1.442695
    %v902 = vpow.pop %v901
    %v903 = vmul.f32 %v872, 1.442695
    %v904 = vpow.pop %v903
    %905 = vadd.xlane.f32.xlu0 %v874
    %v906 = vpop.xlane.xlu0 %905
    %907 = vadd.xlane.f32.xlu0 %v876
    %v908 = vpop.xlane.xlu0 %907
    %909 = vadd.xlane.f32.xlu0 %v878
    %v910 = vpop.xlane.xlu0 %909
    %911 = vadd.xlane.f32.xlu0 %v880
    %v912 = vpop.xlane.xlu0 %911
    %913 = vadd.xlane.f32.xlu0 %v882
    %v914 = vpop.xlane.xlu0 %913
    %915 = vadd.xlane.f32.xlu0 %v884
    %v916 = vpop.xlane.xlu0 %915
    %917 = vadd.xlane.f32.xlu0 %v886
    %v918 = vpop.xlane.xlu0 %917
    %919 = vadd.xlane.f32.xlu0 %v888
    %v920 = vpop.xlane.xlu0 %919
    %921 = vadd.xlane.f32.xlu0 %v890
    %v922 = vpop.xlane.xlu0 %921
    %923 = vadd.xlane.f32.xlu0 %v892
    %v924 = vpop.xlane.xlu0 %923
    %925 = vadd.xlane.f32.xlu0 %v894
    %v926 = vpop.xlane.xlu0 %925
    %927 = vadd.xlane.f32.xlu0 %v896
    %v928 = vpop.xlane.xlu0 %927
    %929 = vadd.xlane.f32.xlu0 %v898
    %v930 = vpop.xlane.xlu0 %929
    %931 = vadd.xlane.f32.xlu0 %v900
    %v932 = vpop.xlane.xlu0 %931
    %933 = vadd.xlane.f32.xlu0 %v902
    %v934 = vpop.xlane.xlu0 %933
    %935 = vadd.xlane.f32.xlu0 %v904
    %v936 = vpop.xlane.xlu0 %935
    %v937 = vlog2.pop %v906
    %v938 = vmul.f32 %v937, 0.6931472
    %v939 = vlog2.pop %v908
    %v940 = vmul.f32 %v939, 0.6931472
    %v941 = vlog2.pop %v910
    %v942 = vmul.f32 %v941, 0.6931472
    %v943 = vlog2.pop %v912
    %v944 = vmul.f32 %v943, 0.6931472
    %v945 = vlog2.pop %v914
    %v946 = vmul.f32 %v945, 0.6931472
    %v947 = vlog2.pop %v916
    %v948 = vmul.f32 %v947, 0.6931472
    %v949 = vlog2.pop %v918
    %v950 = vmul.f32 %v949, 0.6931472
    %v951 = vlog2.pop %v920
    %v952 = vmul.f32 %v951, 0.6931472
    %v953 = vlog2.pop %v922
    %v954 = vmul.f32 %v953, 0.6931472
    %v955 = vlog2.pop %v924
    %v956 = vmul.f32 %v955, 0.6931472
    %v957 = vlog2.pop %v926
    %v958 = vmul.f32 %v957, 0.6931472
    %v959 = vlog2.pop %v928
    %v960 = vmul.f32 %v959, 0.6931472
    %v961 = vlog2.pop %v930
    %v962 = vmul.f32 %v961, 0.6931472
    %v963 = vlog2.pop %v932
    %v964 = vmul.f32 %v963, 0.6931472
    %v965 = vlog2.pop %v934
    %v966 = vmul.f32 %v965, 0.6931472
    %v967 = vlog2.pop %v936
    %v968 = vmul.f32 %v967, 0.6931472
    %v969 = vsub.f32 %v857, %v938
    %v970 = vsub.f32 %v858, %v940
    %v971 = vsub.f32 %v859, %v942
    %v972 = vsub.f32 %v860, %v944
    %v973 = vsub.f32 %v861, %v946
    %v974 = vsub.f32 %v862, %v948
    %v975 = vsub.f32 %v863, %v950
    %v976 = vsub.f32 %v864, %v952
    %v977 = vsub.f32 %v865, %v954
    %v978 = vsub.f32 %v866, %v956
    %v979 = vsub.f32 %v867, %v958
    %v980 = vsub.f32 %v868, %v960
    %v981 = vsub.f32 %v869, %v962
    %v982 = vsub.f32 %v870, %v964
    %v983 = vsub.f32 %v871, %v966
    %v984 = vsub.f32 %v872, %v968
    %v985 = vsel %vm808, %v969, 0.0
    %v986 = vsel %vm808, %v970, 0.0
    %v987 = vsel %vm808, %v971, 0.0
    %v988 = vsel %vm808, %v972, 0.0
    %v989 = vsel %vm808, %v973, 0.0
    %v990 = vsel %vm808, %v974, 0.0
    %v991 = vsel %vm808, %v975, 0.0
    %v992 = vsel %vm808, %v976, 0.0
    %v993 = vsel %vm808, %v977, 0.0
    %v994 = vsel %vm808, %v978, 0.0
    %v995 = vsel %vm808, %v979, 0.0
    %v996 = vsel %vm808, %v980, 0.0
    %v997 = vsel %vm808, %v981, 0.0
    %v998 = vsel %vm808, %v982, 0.0
    %v999 = vsel %vm808, %v983, 0.0
    %v1000 = vsel %vm808, %v984, 0.0
    %1001 = vst [vmem:[#allocation11] sm:$0xff] %v985
    %1002 = vst [vmem:[#allocation11 + $0x8] sm:$0xff] %v986
    %1003 = vst [vmem:[#allocation11 + $0x10] sm:$0xff] %v987
    %1004 = vst [vmem:[#allocation11 + $0x18] sm:$0xff] %v988
    %1005 = vst [vmem:[#allocation11 + $0x20] sm:$0xff] %v989
    %1006 = vst [vmem:[#allocation11 + $0x28] sm:$0xff] %v990
    %1007 = vst [vmem:[#allocation11 + $0x30] sm:$0xff] %v991
    %1008 = vst [vmem:[#allocation11 + $0x38] sm:$0xff] %v992
    %1009 = vst [vmem:[#allocation11 + $0x40] sm:$0xff] %v993
    %1010 = vst [vmem:[#allocation11 + $0x48] sm:$0xff] %v994
    %1011 = vst [vmem:[#allocation11 + $0x50] sm:$0xff] %v995
    %1012 = vst [vmem:[#allocation11 + $0x58] sm:$0xff] %v996
    %1013 = vst [vmem:[#allocation11 + $0x60] sm:$0xff] %v997
    %1014 = vst [vmem:[#allocation11 + $0x68] sm:$0xff] %v998
    %1015 = vst [vmem:[#allocation11 + $0x70] sm:$0xff] %v999
    %1016 = vst [vmem:[#allocation11 + $0x78] sm:$0xff] %v1000
    // Predicated region
    $region54: #{tpu_custom_call.1} parent=1 // pred_check
      _
    $region55: #{tpu_custom_call.1} parent=1 // pred_check_branch
      %1018 = sbr.rel (0) target = $region57
    $region56: #{tpu_custom_call.1} parent=1 // pred_region
      %1020 = vsyncadd [#allocation4], 0
      %s1021 = sshll.u32 [#allocation11], 4
      %s1022 = int_to_ptr.vmem [resolvable:$true] %s1021
      %s1023 = sshll.u32 %s8, 4
      %s1024 = int_to_ptr.hbm [resolvable:$true] %s1023
      %1029 = dma.vmem_to_hbm [thread:$0]  %s1022, 2048, %s1024, [#allocation4], 128, 128, 8
    $region57: #{tpu_custom_call.1} parent=1 // pred_fallthru
      _
    // Predicated region
    $region58: #{tpu_custom_call.1} parent=1 // pred_check
      _
    $region59: #{tpu_custom_call.1} parent=1 // pred_check_branch
      %1031 = sbr.rel (0) target = $region61
    $region60: #{tpu_custom_call.1} parent=1 // pred_region
      %1033 = dma.done [#allocation4], 2048
    $region61: #{tpu_custom_call.1} parent=1 // pred_fallthru
      _
    %1034 = vsyncpa [#allocation3], 1
    %1035 = vsyncpa [#allocation6], 1
    %1036 = vsyncpa [#allocation9], 1
    %1037 = vsyncpa [#allocation4], 1

</llo_original>
